<compile_context>
chip_gen: v7x
topology: tpu7x:2x2x1
jax: 0.10.0
libtpu: 0.0.40
codegen_flags: <defaults>
</compile_context>

<pallas_src>
import functools
import math

import jax
import jax.numpy as jnp
import numpy as np
from jax.experimental import pallas as pl
from jax.experimental.pallas import tpu as pltpu

LN_EPS = 1e-5
_INV_SQRT2 = 1.0 / math.sqrt(2.0)


def _round_up(x, m):
    return -(-x // m) * m


# --------------------------------------------------------------------------- #
# Kernel
# --------------------------------------------------------------------------- #
def _mlp_kernel(x_ref, w_in_ref, b_in_ref, w_out_ref, c1_ref, b_out_ref,
                o_ref, acc_ref, s1_ref, s2_ref, *, inv_d_mlp, approx_gelu):
    k = pl.program_id(1)

    @pl.when(k == 0)
    def _():
        acc_ref[...] = jnp.zeros_like(acc_ref)
        s1_ref[...] = jnp.zeros_like(s1_ref)
        s2_ref[...] = jnp.zeros_like(s2_ref)

    # pre = x @ W_in[:, k-tile] + b_in[k-tile]   (bf16 MXU, f32 accumulation)
    pre = jnp.dot(x_ref[...], w_in_ref[...], preferred_element_type=jnp.float32)
    pre = pre + b_in_ref[...]

    # GELU: exact erf form matches nn.GELU() default; tanh form is an opt-in
    # that moves the transcendental onto the EUP (v6e/v7x VALU relief).
    if approx_gelu:
        mid = jax.nn.gelu(pre, approximate=True)
    else:
        mid = 0.5 * pre * (1.0 + jax.lax.erf(pre * _INV_SQRT2))

    # One-pass LayerNorm statistics over d_mlp, streamed across k tiles.
    s1_ref[...] += jnp.sum(mid, axis=-1, keepdims=True)
    s2_ref[...] += jnp.sum(mid * mid, axis=-1, keepdims=True)

    # Second matmul against the ln_w-folded W_out row tile, f32 accumulation.
    acc_ref[...] += jnp.dot(mid.astype(w_out_ref.dtype), w_out_ref[...],
                            preferred_element_type=jnp.float32)

    @pl.when(k == pl.num_programs(1) - 1)
    def _():
        mu = s1_ref[...] * inv_d_mlp
        var = jnp.maximum(s2_ref[...] * inv_d_mlp - mu * mu, 0.0)
        inv = jax.lax.rsqrt(var + LN_EPS)          # EUP rsqrt on (tm,1) stats
        # out = inv*(mid @ W_out') - (mu*inv)*(ln_w @ W_out) + (ln_b @ W_out + b_out)
        out = acc_ref[...] * inv - (mu * inv) * c1_ref[...] + b_out_ref[...]
        o_ref[...] = out.astype(o_ref.dtype)


# --------------------------------------------------------------------------- #
# Wrapper
# --------------------------------------------------------------------------- #
def _vmem_capacity_bytes():
    try:
        return int(pltpu.get_tpu_info().vmem_capacity_bytes)
    except Exception:
        return 64 * 1024 * 1024          # conservative floor (v7x per-TC VMEM)


def _default_tm():
    try:
        kind = jax.devices()[0].device_kind.lower()
    except Exception:
        kind = ""
    # v5e's MXU M-dim is already filled at 128; 256 only adds VMEM pressure.
    if ("v5 lite" in kind) or ("v5e" in kind):
        return 128
    return 256


def _estimate_need(Dp, tk, tm, cds, ods):
    fixed = (2 * tm * Dp * cds           # x row tile (double-buffered over rows)
             + 2 * tm * Dp * ods         # output tile
             + tm * Dp * 4               # f32 output accumulator scratch
             + 4 * Dp * 4                # c1 + folded bias (tiny)
             + 4 * tm * 4)               # LN stat scratch
    per_tk = (2 * Dp * tk * cds          # W_in column tile (double-buffered)
              + 2 * tk * Dp * cds        # folded W_out row tile (double-buffered)
              + 2 * tk * 4               # b_in tile
              + 3 * tm * tk * 4)         # live f32 intermediates (pre / mid)
    return fixed + per_tk


def _pick_tk(Dp, Dmp, tm, cds, ods, vmem_cap):
    budget = int(0.70 * vmem_cap)
    for tk in range(Dmp, 127, -128):     # largest d_mlp tile that fits VMEM
        if Dmp % tk:
            continue
        need = _estimate_need(Dp, tk, tm, cds, ods)
        if need <= budget:
            return tk, need
    return 128, _estimate_need(Dp, 128, tm, cds, ods)


def mlp_forward(x, W_in, b_in, W_out, b_out, ln_w, ln_b, *,
                compute_dtype=jnp.bfloat16, tm=None, tk=None,
                approx_gelu=False):
    """x: [batch, pos, d_model] -> [batch, pos, d_model]."""
    B, P, D = x.shape
    Dm = W_in.shape[1]
    M = B * P
    out_dtype = x.dtype
    compute_dtype = jnp.dtype(compute_dtype)
    cds = compute_dtype.itemsize
    ods = jnp.dtype(out_dtype).itemsize
    f32 = jnp.float32

    # --- fold LayerNorm affine into the output projection (one-time, f32) ---
    w_out_f = W_out.astype(f32) * ln_w.astype(f32)[:, None]   # diag(ln_w) @ W_out
    c1 = jnp.sum(w_out_f, axis=0, keepdims=True)              # ln_w @ W_out   (1, D)
    b_out_f = (ln_b.astype(f32) @ W_out.astype(f32)
               + b_out.astype(f32)).reshape(1, D)             # ln_b @ W_out + b_out

    # --- tiling / padding (lane-dense feature dims, tm-aligned rows) ---
    if tm is None:
        tm = _default_tm()
    tm_eff = min(tm, _round_up(M, 8))
    Mp = _round_up(M, tm_eff)
    Dp = _round_up(D, 128)
    Dmp = _round_up(Dm, 128)

    vmem_cap = _vmem_capacity_bytes()
    if tk is None:
        tk, need = _pick_tk(Dp, Dmp, tm_eff, cds, ods, vmem_cap)
    else:
        assert tk % 128 == 0 and Dmp % tk == 0
        need = _estimate_need(Dp, tk, tm_eff, cds, ods)
    vmem_limit = int(min(max(int(1.25 * need), 32 * 1024 * 1024),
                         int(0.95 * vmem_cap)))

    # Cast to the MXU compute dtype (bf16 by default) in the wrapper so weight
    # and activation DMAs move half the bytes and both matmuls take the fast
    # MXU path; accumulation stays f32 inside the kernel.
    x2 = jnp.pad(x.reshape(M, D).astype(compute_dtype),
                 ((0, Mp - M), (0, Dp - D)))
    w_in_c = jnp.pad(W_in.astype(compute_dtype), ((0, Dp - D), (0, Dmp - Dm)))
    w_out_c = jnp.pad(w_out_f.astype(compute_dtype), ((0, Dmp - Dm), (0, Dp - D)))
    b_in2 = jnp.pad(b_in.astype(f32).reshape(1, Dm), ((0, 0), (0, Dmp - Dm)))
    c1p = jnp.pad(c1, ((0, 0), (0, Dp - D)))
    b_out_p = jnp.pad(b_out_f, ((0, 0), (0, Dp - D)))

    kernel = functools.partial(_mlp_kernel, inv_d_mlp=1.0 / float(Dm),
                               approx_gelu=approx_gelu)

    out = pl.pallas_call(
        kernel,
        out_shape=jax.ShapeDtypeStruct((Mp, Dp), out_dtype),
        grid_spec=pltpu.PrefetchScalarGridSpec(
            num_scalar_prefetch=0,
            grid=(Mp // tm_eff, Dmp // tk),
            in_specs=[
                pl.BlockSpec((tm_eff, Dp), lambda i, k: (i, 0)),  # x rows (reused over k)
                pl.BlockSpec((Dp, tk), lambda i, k: (0, k)),      # W_in column tile
                pl.BlockSpec((1, tk), lambda i, k: (0, k)),       # b_in tile
                pl.BlockSpec((tk, Dp), lambda i, k: (k, 0)),      # folded W_out row tile
                pl.BlockSpec((1, Dp), lambda i, k: (0, 0)),       # c1 = ln_w @ W_out
                pl.BlockSpec((1, Dp), lambda i, k: (0, 0)),       # b_out + ln_b @ W_out
            ],
            out_specs=pl.BlockSpec((tm_eff, Dp), lambda i, k: (i, 0)),
            scratch_shapes=[
                pltpu.VMEM((tm_eff, Dp), jnp.float32),   # output accumulator
                pltpu.VMEM((tm_eff, 1), jnp.float32),    # sum(mid)
                pltpu.VMEM((tm_eff, 1), jnp.float32),    # sum(mid^2)
            ]),
        compiler_params=pltpu.CompilerParams(
            dimension_semantics=("parallel", "arbitrary"),
            vmem_limit_bytes=vmem_limit),
    )(x2, w_in_c, b_in2, w_out_c, c1p, b_out_p)

    return out[:M, :D].reshape(B, P, D)


# --------------------------------------------------------------------------- #
# Reference + self-test
# --------------------------------------------------------------------------- #
def mlp_reference(x, W_in, b_in, W_out, b_out, ln_w, ln_b):
    f32 = jnp.float32
    pre = jnp.einsum('bpd,dm->bpm', x.astype(f32), W_in.astype(f32)) + b_in
    mid = 0.5 * pre * (1.0 + jax.lax.erf(pre * _INV_SQRT2))
    mu = mid.mean(-1, keepdims=True)
    c = mid - mu
    inv = jax.lax.rsqrt((c * c).mean(-1, keepdims=True) + LN_EPS)
    post = c * inv * ln_w + ln_b
    return jnp.einsum('bpm,md->bpd', post, W_out.astype(f32)) + b_out


def _make_case(key, batch, pos, d_model, d_mlp, dtype=jnp.float32):
    ks = jax.random.split(key, 7)
    x = jax.random.normal(ks[0], (batch, pos, d_model), dtype=dtype)
    W_in = jax.random.normal(ks[1], (d_model, d_mlp), dtype=dtype) * 0.02
    b_in = jax.random.normal(ks[2], (d_mlp,), dtype=dtype) * 0.02
    W_out = jax.random.normal(ks[3], (d_mlp, d_model), dtype=dtype) * 0.02
    b_out = jax.random.normal(ks[4], (d_model,), dtype=dtype) * 0.02
    ln_w = 1.0 + 0.1 * jax.random.normal(ks[5], (d_mlp,), dtype=dtype)
    ln_b = 0.1 * jax.random.normal(ks[6], (d_mlp,), dtype=dtype)
    return x, W_in, b_in, W_out, b_out, ln_w, ln_b


if __name__ == "__main__":
    key = jax.random.PRNGKey(0)
    k1, k2 = jax.random.split(key)

    # Case 1: small module-consistent config (d_mlp = 4 * d_model), f32 path.
    args1 = _make_case(k1, 2, 8, 32, 128)
    out1 = jax.block_until_ready(mlp_forward(*args1, compute_dtype=jnp.float32))
    ref1 = mlp_reference(*args1)
    np.testing.assert_allclose(np.asarray(out1), np.asarray(ref1),
                               rtol=2e-3, atol=2e-3)

    # Case 2: bf16 MXU path with the d_mlp-streaming grid exercised (tk < d_mlp).
    args2 = _make_case(k2, 2, 8, 128, 512)
    out2 = jax.block_until_ready(
        mlp_forward(*args2, compute_dtype=jnp.bfloat16, tk=256))
    ref2 = mlp_reference(*args2)
    np.testing.assert_allclose(np.asarray(out2), np.asarray(ref2),
                               rtol=6e-2, atol=6e-2)

    print("KERNEL_OK")
</pallas_src>

<mosaic_0001>
module attributes {stable_mosaic.version = 11 : i64} {
  func.func @_mlp_kernel(%arg0: i32, %arg1: i32, %arg2: memref<16x128xf32, #tpu.memory_space<vmem>>, %arg3: memref<128x128xf32, #tpu.memory_space<vmem>>, %arg4: memref<1x128xf32, #tpu.memory_space<vmem>>, %arg5: memref<128x128xf32, #tpu.memory_space<vmem>>, %arg6: memref<1x128xf32, #tpu.memory_space<vmem>>, %arg7: memref<1x128xf32, #tpu.memory_space<vmem>>, %arg8: memref<16x128xf32, #tpu.memory_space<vmem>>, %arg9: memref<16x128xf32, #tpu.memory_space<vmem>>, %arg10: memref<16x1xf32, #tpu.memory_space<vmem>>, %arg11: memref<16x1xf32, #tpu.memory_space<vmem>>) attributes {dimension_semantics = [#tpu.dimension_semantics<parallel>, #tpu.dimension_semantics<arbitrary>], iteration_bounds = array<i64: 1, 1>, scalar_prefetch = 0 : i64, scratch_operands = 3 : i64, tpu.core_type = #tpu.core_type<tc>, window_params = [{transform_indices = @transform_0, window_bounds = array<i64: 16, 128>}, {transform_indices = @transform_1, window_bounds = array<i64: 128, 128>}, {transform_indices = @transform_2, window_bounds = array<i64: 1, 128>}, {transform_indices = @transform_3, window_bounds = array<i64: 128, 128>}, {pipeline_mode = #tpu.pipeline_mode<synchronous>, transform_indices = @transform_4, window_bounds = array<i64: 1, 128>}, {pipeline_mode = #tpu.pipeline_mode<synchronous>, transform_indices = @transform_5, window_bounds = array<i64: 1, 128>}, {transform_indices = @transform_6, window_bounds = array<i64: 16, 128>}]} {
    %c0_i32 = arith.constant 0 : i32
    %0 = arith.cmpi eq, %arg1, %c0_i32 : i32
    %1 = arith.extui %0 : i1 to i32
    %c0_i32_0 = arith.constant 0 : i32
    %2 = arith.cmpi ne, %1, %c0_i32_0 : i32
    scf.if %2 {
      %cst_28 = arith.constant 0.000000e+00 : f32
      %36 = vector.broadcast %cst_28 : f32 to vector<16x128xf32>
      %c0_29 = arith.constant 0 : index
      %c0_30 = arith.constant 0 : index
      %37 = vector.load %arg9[%c0_29, %c0_30] : memref<16x128xf32, #tpu.memory_space<vmem>>, vector<16x128xf32>
      tpu.vector_store %arg9[%c0_29, %c0_30], %36 {strides = array<i32>} : memref<16x128xf32, #tpu.memory_space<vmem>>, vector<16x128xf32>,
      %cst_31 = arith.constant 0.000000e+00 : f32
      %38 = vector.broadcast %cst_31 : f32 to vector<16x1xf32>
      %c0_32 = arith.constant 0 : index
      %c0_33 = arith.constant 0 : index
      %39 = vector.load %arg10[%c0_32, %c0_33] : memref<16x1xf32, #tpu.memory_space<vmem>>, vector<16x1xf32>
      tpu.vector_store %arg10[%c0_32, %c0_33], %38 {strides = array<i32>} : memref<16x1xf32, #tpu.memory_space<vmem>>, vector<16x1xf32>,
      %cst_34 = arith.constant 0.000000e+00 : f32
      %40 = vector.broadcast %cst_34 : f32 to vector<16x1xf32>
      %c0_35 = arith.constant 0 : index
      %c0_36 = arith.constant 0 : index
      %41 = vector.load %arg11[%c0_35, %c0_36] : memref<16x1xf32, #tpu.memory_space<vmem>>, vector<16x1xf32>
      tpu.vector_store %arg11[%c0_35, %c0_36], %40 {strides = array<i32>} : memref<16x1xf32, #tpu.memory_space<vmem>>, vector<16x1xf32>,
    } else {
    }
    %c0 = arith.constant 0 : index
    %c0_1 = arith.constant 0 : index
    %3 = vector.load %arg2[%c0, %c0_1] : memref<16x128xf32, #tpu.memory_space<vmem>>, vector<16x128xf32>
    %c0_2 = arith.constant 0 : index
    %c0_3 = arith.constant 0 : index
    %4 = vector.load %arg3[%c0_2, %c0_3] : memref<128x128xf32, #tpu.memory_space<vmem>>, vector<128x128xf32>
    %cst = arith.constant dense<0.000000e+00> : vector<16x128xf32>
    %5 = tpu.matmul %3, %4, %cst {dimension_numbers = #tpu.dot_dimension_numbers<[1], [0], [0], [1], [0, 0, 1, 1], [], []>} : vector<16x128xf32>, vector<128x128xf32>, vector<16x128xf32> -> vector<16x128xf32>
    %c0_4 = arith.constant 0 : index
    %c0_5 = arith.constant 0 : index
    %6 = vector.load %arg4[%c0_4, %c0_5] : memref<1x128xf32, #tpu.memory_space<vmem>>, vector<1x128xf32>
    %7 = vector.broadcast %6 : vector<1x128xf32> to vector<16x128xf32>
    %8 = arith.addf %5, %7 : vector<16x128xf32>
    %cst_6 = arith.constant 5.000000e-01 : f32
    %9 = vector.broadcast %cst_6 : f32 to vector<16x128xf32>
    %10 = arith.mulf %9, %8 : vector<16x128xf32>
    %cst_7 = arith.constant 0.707106769 : f32
    %11 = vector.broadcast %cst_7 : f32 to vector<16x128xf32>
    %12 = arith.mulf %8, %11 : vector<16x128xf32>
    %13 = math.erf %12 : vector<16x128xf32>
    %cst_8 = arith.constant 1.000000e+00 : f32
    %14 = vector.broadcast %cst_8 : f32 to vector<16x128xf32>
    %15 = arith.addf %14, %13 : vector<16x128xf32>
    %16 = arith.mulf %10, %15 : vector<16x128xf32>
    %c0_9 = arith.constant 0 : index
    %c0_10 = arith.constant 0 : index
    %17 = vector.load %arg10[%c0_9, %c0_10] : memref<16x1xf32, #tpu.memory_space<vmem>>, vector<16x1xf32>
    %cst_11 = arith.constant dense<0.000000e+00> : vector<16xf32>
    %18 = vector.multi_reduction <add>, %16, %cst_11 [1] : vector<16x128xf32> to vector<16xf32>
    %19 = vector.shape_cast %18 : vector<16xf32> to vector<16x1xf32>
    %20 = arith.addf %17, %19 : vector<16x1xf32>
    %c0_12 = arith.constant 0 : index
    %c0_13 = arith.constant 0 : index
    %21 = vector.load %arg10[%c0_12, %c0_13] : memref<16x1xf32, #tpu.memory_space<vmem>>, vector<16x1xf32>
    tpu.vector_store %arg10[%c0_12, %c0_13], %20 {strides = array<i32>} : memref<16x1xf32, #tpu.memory_space<vmem>>, vector<16x1xf32>,
    %c0_14 = arith.constant 0 : index
    %c0_15 = arith.constant 0 : index
    %22 = vector.load %arg11[%c0_14, %c0_15] : memref<16x1xf32, #tpu.memory_space<vmem>>, vector<16x1xf32>
    %23 = arith.mulf %16, %16 : vector<16x128xf32>
    %cst_16 = arith.constant dense<0.000000e+00> : vector<16xf32>
    %24 = vector.multi_reduction <add>, %23, %cst_16 [1] : vector<16x128xf32> to vector<16xf32>
    %25 = vector.shape_cast %24 : vector<16xf32> to vector<16x1xf32>
    %26 = arith.addf %22, %25 : vector<16x1xf32>
    %c0_17 = arith.constant 0 : index
    %c0_18 = arith.constant 0 : index
    %27 = vector.load %arg11[%c0_17, %c0_18] : memref<16x1xf32, #tpu.memory_space<vmem>>, vector<16x1xf32>
    tpu.vector_store %arg11[%c0_17, %c0_18], %26 {strides = array<i32>} : memref<16x1xf32, #tpu.memory_space<vmem>>, vector<16x1xf32>,
    %c0_19 = arith.constant 0 : index
    %c0_20 = arith.constant 0 : index
    %28 = vector.load %arg9[%c0_19, %c0_20] : memref<16x128xf32, #tpu.memory_space<vmem>>, vector<16x128xf32>
    %c0_21 = arith.constant 0 : index
    %c0_22 = arith.constant 0 : index
    %29 = vector.load %arg5[%c0_21, %c0_22] : memref<128x128xf32, #tpu.memory_space<vmem>>, vector<128x128xf32>
    %cst_23 = arith.constant dense<0.000000e+00> : vector<16x128xf32>
    %30 = tpu.matmul %16, %29, %cst_23 {dimension_numbers = #tpu.dot_dimension_numbers<[1], [0], [0], [1], [0, 0, 1, 1], [], []>} : vector<16x128xf32>, vector<128x128xf32>, vector<16x128xf32> -> vector<16x128xf32>
    %31 = arith.addf %28, %30 : vector<16x128xf32>
    %c0_24 = arith.constant 0 : index
    %c0_25 = arith.constant 0 : index
    %32 = vector.load %arg9[%c0_24, %c0_25] : memref<16x128xf32, #tpu.memory_space<vmem>>, vector<16x128xf32>
    tpu.vector_store %arg9[%c0_24, %c0_25], %31 {strides = array<i32>} : memref<16x128xf32, #tpu.memory_space<vmem>>, vector<16x128xf32>,
    %c0_i32_26 = arith.constant 0 : i32
    %33 = arith.cmpi eq, %arg1, %c0_i32_26 : i32
    %34 = arith.extui %33 : i1 to i32
    %c0_i32_27 = arith.constant 0 : i32
    %35 = arith.cmpi ne, %34, %c0_i32_27 : i32
    scf.if %35 {
      %c0_28 = arith.constant 0 : index
      %c0_29 = arith.constant 0 : index
      %36 = vector.load %arg10[%c0_28, %c0_29] : memref<16x1xf32, #tpu.memory_space<vmem>>, vector<16x1xf32>
      %cst_30 = arith.constant 7.812500e-03 : f32
      %37 = vector.broadcast %cst_30 : f32 to vector<16x1xf32>
      %38 = arith.mulf %36, %37 : vector<16x1xf32>
      %c0_31 = arith.constant 0 : index
      %c0_32 = arith.constant 0 : index
      %39 = vector.load %arg11[%c0_31, %c0_32] : memref<16x1xf32, #tpu.memory_space<vmem>>, vector<16x1xf32>
      %cst_33 = arith.constant 7.812500e-03 : f32
      %40 = vector.broadcast %cst_33 : f32 to vector<16x1xf32>
      %41 = arith.mulf %39, %40 : vector<16x1xf32>
      %42 = arith.mulf %38, %38 : vector<16x1xf32>
      %43 = arith.subf %41, %42 : vector<16x1xf32>
      %cst_34 = arith.constant 0.000000e+00 : f32
      %44 = vector.broadcast %cst_34 : f32 to vector<16x1xf32>
      %45 = arith.maximumf %43, %44 : vector<16x1xf32>
      %cst_35 = arith.constant 9.99999974E-6 : f32
      %46 = vector.broadcast %cst_35 : f32 to vector<16x1xf32>
      %47 = arith.addf %45, %46 : vector<16x1xf32>
      %48 = math.rsqrt %47 : vector<16x1xf32>
      %c0_36 = arith.constant 0 : index
      %c0_37 = arith.constant 0 : index
      %49 = vector.load %arg9[%c0_36, %c0_37] : memref<16x128xf32, #tpu.memory_space<vmem>>, vector<16x128xf32>
      %50 = vector.broadcast %48 : vector<16x1xf32> to vector<16x128xf32>
      %51 = arith.mulf %49, %50 : vector<16x128xf32>
      %52 = arith.mulf %38, %48 : vector<16x1xf32>
      %c0_38 = arith.constant 0 : index
      %c0_39 = arith.constant 0 : index
      %53 = vector.load %arg6[%c0_38, %c0_39] : memref<1x128xf32, #tpu.memory_space<vmem>>, vector<1x128xf32>
      %54 = vector.broadcast %52 : vector<16x1xf32> to vector<16x128xf32>
      %55 = vector.broadcast %53 : vector<1x128xf32> to vector<16x128xf32>
      %56 = arith.mulf %54, %55 : vector<16x128xf32>
      %57 = arith.subf %51, %56 : vector<16x128xf32>
      %c0_40 = arith.constant 0 : index
      %c0_41 = arith.constant 0 : index
      %58 = vector.load %arg7[%c0_40, %c0_41] : memref<1x128xf32, #tpu.memory_space<vmem>>, vector<1x128xf32>
      %59 = vector.broadcast %58 : vector<1x128xf32> to vector<16x128xf32>
      %60 = arith.addf %57, %59 : vector<16x128xf32>
      %c0_42 = arith.constant 0 : index
      %c0_43 = arith.constant 0 : index
      %61 = vector.load %arg8[%c0_42, %c0_43] : memref<16x128xf32, #tpu.memory_space<vmem>>, vector<16x128xf32>
      tpu.vector_store %arg8[%c0_42, %c0_43], %60 {strides = array<i32>} : memref<16x128xf32, #tpu.memory_space<vmem>>, vector<16x128xf32>,
    } else {
    }
    return
  }
  func.func @transform_0(%arg0: i32, %arg1: i32) -> (i32, i32) {
    %c0_i32 = arith.constant 0 : i32
    %c0_i32_0 = arith.constant 0 : i32
    return %arg0, %c0_i32 : i32, i32
  }
  func.func @transform_1(%arg0: i32, %arg1: i32) -> (i32, i32) {
    %c0_i32 = arith.constant 0 : i32
    %c0_i32_0 = arith.constant 0 : i32
    return %c0_i32, %arg1 : i32, i32
  }
  func.func @transform_2(%arg0: i32, %arg1: i32) -> (i32, i32) {
    %c0_i32 = arith.constant 0 : i32
    %c0_i32_0 = arith.constant 0 : i32
    return %c0_i32, %arg1 : i32, i32
  }
  func.func @transform_3(%arg0: i32, %arg1: i32) -> (i32, i32) {
    %c0_i32 = arith.constant 0 : i32
    %c0_i32_0 = arith.constant 0 : i32
    return %arg1, %c0_i32 : i32, i32
  }
  func.func @transform_4(%arg0: i32, %arg1: i32) -> (i32, i32) {
    %c0_i32 = arith.constant 0 : i32
    %c0_i32_0 = arith.constant 0 : i32
    %c0_i32_1 = arith.constant 0 : i32
    return %c0_i32, %c0_i32_0 : i32, i32
  }
  func.func @transform_5(%arg0: i32, %arg1: i32) -> (i32, i32) {
    %c0_i32 = arith.constant 0 : i32
    %c0_i32_0 = arith.constant 0 : i32
    %c0_i32_1 = arith.constant 0 : i32
    return %c0_i32, %c0_i32_0 : i32, i32
  }
  func.func @transform_6(%arg0: i32, %arg1: i32) -> (i32, i32) {
    %c0_i32 = arith.constant 0 : i32
    %c0_i32_0 = arith.constant 0 : i32
    return %arg0, %c0_i32 : i32, i32
  }
}

</mosaic_0001>

<llo_original>
// kernel: tpu_custom_call.1
$region0: #{tpu_custom_call.1}
  #allocation0 [shape = 'u32[]', space=smem, size = 0x4, offset = 0x4, fixed_abs, tag = 'smem constant byte address 0x4 - core index']
  #allocation1 [shape = 'u32[144,128]{1,0:T(1,128)}', space=vmem, size = 0x12000, scoped, tag = 'internal scratch']
  #allocation2 [shape = 'f32[16,128]{1,0:T(8,128)}', space=vmem, size = 0x2000, scoped, tag = 'scratch operand']
  #allocation3 [shape = 'f32[16,1]{1,0:T(8,128)}', space=vmem, size = 0x2000, scoped, tag = 'scratch operand']
  #allocation4 [shape = 'f32[16,1]{1,0:T(8,128)}', space=vmem, size = 0x2000, scoped, tag = 'scratch operand']
  %s0 = inlined_call_operand.hbm [shape: f32[16,128], index: 0, kind: input, shape index: {}]
  %s1 = inlined_call_operand.hbm [shape: f32[128,128], index: 1, kind: input, shape index: {}]
  %s2 = inlined_call_operand.vmem [shape: f32[1,128], index: 2, kind: input, shape index: {}]
  %s3 = inlined_call_operand.hbm [shape: f32[128,128], index: 3, kind: input, shape index: {}]
  %s4 = inlined_call_operand.vmem [shape: f32[1,128], index: 4, kind: input, shape index: {}]
  %s5 = inlined_call_operand.vmem [shape: f32[1,128], index: 5, kind: input, shape index: {}]
  %s6 = inlined_call_operand.hbm [shape: f32[16,128], index: 6, kind: output, shape index: {}]
  %s7 = sld [smem:[#allocation0]]
  $region54: #{tpu_custom_call.1} parent=0
    _
  %s9 = ssub.s32 1, %s7
  %s10 = scalar_select 0, %s9, %s7
  $region1: #{tpu_custom_call.1} parent=0
    #allocation5 [shape = 'u8[8192]{0}', space=vmem, size = 0x2000, scoped, tag = 'input window, operand 0, single buffered']
    #allocation6 [shape = 's32[1]{0}', space=sflag, size = 0x4, scoped, tag = 'scoped memory for tpu_custom_call.1']
    #allocation7 [shape = 's32[1]{0}', space=sflag, size = 0x4, scoped, tag = 'scoped memory for tpu_custom_call.1']
    #allocation8 [shape = 'u8[65536]{0}', space=vmem, size = 0x10000, scoped, tag = 'input window, operand 1, single buffered']
    #allocation9 [shape = 's32[1]{0}', space=sflag, size = 0x4, scoped, tag = 'scoped memory for tpu_custom_call.1']
    #allocation10 [shape = 'u8[65536]{0}', space=vmem, size = 0x10000, scoped, tag = 'input window, operand 3, single buffered']
    #allocation11 [shape = 'u8[8192]{0}', space=vmem, size = 0x2000, scoped, tag = 'output window, operand 0, single buffered']
    %11 = vsyncpa [#allocation6], 0
    %12 = vsyncpa [#allocation9], 0
    %13 = vsyncpa [#allocation7], 0
    // Predicated region
    $region2: #{tpu_custom_call.1} parent=1 // pred_check
      _
    $region3: #{tpu_custom_call.1} parent=1 // pred_check_branch
      %15 = sbr.rel (0) target = $region5
    $region4: #{tpu_custom_call.1} parent=1 // pred_region
      %s17 = ssub.s32 256, 256
      %18 = vsyncadd [#allocation6], %s17
      %s19 = sshll.u32 [#allocation5], 4
      %s20 = int_to_ptr.vmem [resolvable:$true] %s19
      %25 = dma.hbm_to_vmem [thread:$0]  %s0, 256, %s20, [#allocation6], 128, 128, 8
    $region5: #{tpu_custom_call.1} parent=1 // pred_fallthru
      _
    // Predicated region
    $region6: #{tpu_custom_call.1} parent=1 // pred_check
      _
    $region7: #{tpu_custom_call.1} parent=1 // pred_check_branch
      %27 = sbr.rel (0) target = $region9
    $region8: #{tpu_custom_call.1} parent=1 // pred_region
      %s29 = ssub.s32 2048, 2048
      %30 = vsyncadd [#allocation9], %s29
      %s31 = sshll.u32 [#allocation8], 4
      %s32 = int_to_ptr.vmem [resolvable:$true] %s31
      %37 = dma.hbm_to_vmem [thread:$0]  %s1, 2048, %s32, [#allocation9], 128, 128, 8
    $region9: #{tpu_custom_call.1} parent=1 // pred_fallthru
      _
    // Predicated region
    $region10: #{tpu_custom_call.1} parent=1 // pred_check
      _
    $region11: #{tpu_custom_call.1} parent=1 // pred_check_branch
      %39 = sbr.rel (0) target = $region13
    $region12: #{tpu_custom_call.1} parent=1 // pred_region
      _
    $region13: #{tpu_custom_call.1} parent=1 // pred_fallthru
      _
    // Predicated region
    $region14: #{tpu_custom_call.1} parent=1 // pred_check
      _
    $region15: #{tpu_custom_call.1} parent=1 // pred_check_branch
      %41 = sbr.rel (0) target = $region17
    $region16: #{tpu_custom_call.1} parent=1 // pred_region
      %s43 = ssub.s32 2048, 2048
      %44 = vsyncadd [#allocation9], %s43
      %s45 = sshll.u32 [#allocation10], 4
      %s46 = int_to_ptr.vmem [resolvable:$true] %s45
      %51 = dma.hbm_to_vmem [thread:$0]  %s3, 2048, %s46, [#allocation9], 128, 128, 8
    $region17: #{tpu_custom_call.1} parent=1 // pred_fallthru
      _
    // Predicated region
    $region18: #{tpu_custom_call.1} parent=1 // pred_check
      _
    $region19: #{tpu_custom_call.1} parent=1 // pred_check_branch
      %53 = sbr.rel (0) target = $region21
    $region20: #{tpu_custom_call.1} parent=1 // pred_region
      _
    $region21: #{tpu_custom_call.1} parent=1 // pred_fallthru
      _
    // Predicated region
    $region22: #{tpu_custom_call.1} parent=1 // pred_check
      _
    $region23: #{tpu_custom_call.1} parent=1 // pred_check_branch
      %55 = sbr.rel (0) target = $region25
    $region24: #{tpu_custom_call.1} parent=1 // pred_region
      _
    $region25: #{tpu_custom_call.1} parent=1 // pred_fallthru
      _
    // Predicated region
    $region26: #{tpu_custom_call.1} parent=1 // pred_check
      _
    $region27: #{tpu_custom_call.1} parent=1 // pred_check_branch
      %57 = sbr.rel (0) target = $region29
    $region28: #{tpu_custom_call.1} parent=1 // pred_region
      %58 = dma.done [#allocation6], 256
    $region29: #{tpu_custom_call.1} parent=1 // pred_fallthru
      _
    // Predicated region
    $region30: #{tpu_custom_call.1} parent=1 // pred_check
      _
    $region31: #{tpu_custom_call.1} parent=1 // pred_check_branch
      %60 = sbr.rel (0) target = $region33
    $region32: #{tpu_custom_call.1} parent=1 // pred_region
      %61 = dma.done [#allocation9], 2048
    $region33: #{tpu_custom_call.1} parent=1 // pred_fallthru
      _
    // Predicated region
    $region34: #{tpu_custom_call.1} parent=1 // pred_check
      _
    $region35: #{tpu_custom_call.1} parent=1 // pred_check_branch
      %63 = sbr.rel (0) target = $region37
    $region36: #{tpu_custom_call.1} parent=1 // pred_region
      %64 = dma.done [#allocation9], 2048
    $region37: #{tpu_custom_call.1} parent=1 // pred_fallthru
      _
    %p65 = scmp.eq.s32.totalorder 0, 0
    // Predicated region
    $region38: #{tpu_custom_call.1} parent=1 // pred_check
      %p66 = pneg %p65
    $region39: #{tpu_custom_call.1} parent=1 // pred_check_branch
      %68 = sbr.rel (%p66) target = $region41
    $region40: #{tpu_custom_call.1} parent=1 // pred_region
      %69 = vst [vmem:[#allocation2] sm:$0xff] 0.0
      %70 = vst [vmem:[#allocation2 + $0x8] sm:$0xff] 0.0
      %vm71 = vcmask 7168
      %72 = vst.msk [vmem:[#allocation3] sm:$0xff] %vm71, 0.0
      %73 = vst.msk [vmem:[#allocation3 + $0x8] sm:$0xff] %vm71, 0.0
      %74 = vst.msk [vmem:[#allocation4] sm:$0xff] %vm71, 0.0
      %75 = vst.msk [vmem:[#allocation4 + $0x8] sm:$0xff] %vm71, 0.0
    $region41: #{tpu_custom_call.1} parent=1 // pred_fallthru
      _
    %v76 = vld [vmem:[#allocation5] sm:$0xff]
    %v77 = vld [vmem:[#allocation5 + $0x8] sm:$0xff]
    %v78 = vld [vmem:[#allocation8] sm:$0xff]
    %v79 = vld [vmem:[#allocation8 + $0x8] sm:$0xff]
    %v80 = vld [vmem:[#allocation8 + $0x10] sm:$0xff]
    %v81 = vld [vmem:[#allocation8 + $0x18] sm:$0xff]
    %v82 = vld [vmem:[#allocation8 + $0x20] sm:$0xff]
    %v83 = vld [vmem:[#allocation8 + $0x28] sm:$0xff]
    %v84 = vld [vmem:[#allocation8 + $0x30] sm:$0xff]
    %v85 = vld [vmem:[#allocation8 + $0x38] sm:$0xff]
    %v86 = vld [vmem:[#allocation8 + $0x40] sm:$0xff]
    %v87 = vld [vmem:[#allocation8 + $0x48] sm:$0xff]
    %v88 = vld [vmem:[#allocation8 + $0x50] sm:$0xff]
    %v89 = vld [vmem:[#allocation8 + $0x58] sm:$0xff]
    %v90 = vld [vmem:[#allocation8 + $0x60] sm:$0xff]
    %v91 = vld [vmem:[#allocation8 + $0x68] sm:$0xff]
    %v92 = vld [vmem:[#allocation8 + $0x70] sm:$0xff]
    %v93 = vld [vmem:[#allocation8 + $0x78] sm:$0xff]
    %v94 = vld [vmem:[%s2] sm:$0x1]
    %v96 = vlaneseq
    %v97 = vshrl.u32 %v96, 7
    %v98 = vsub.s32 0, %v97
    %v99 = vrot.slane %v94, %v98
    %101 = vmatprep.subr.mxu0 0.0
    %102 = vmatpush1.msra.mxu0 %v78
    %103 = vmatprep.subr.mxu0 0.0
    %104 = vmatpush1.msra.mxu0 %v79
    %105 = vmatprep.subr.mxu0 0.0
    %106 = vmatpush1.msra.mxu0 %v80
    %107 = vmatprep.subr.mxu0 0.0
    %108 = vmatpush1.msra.mxu0 %v81
    %109 = vmatprep.subr.mxu0 0.0
    %110 = vmatpush1.msra.mxu0 %v82
    %111 = vmatprep.subr.mxu0 0.0
    %112 = vmatpush1.msra.mxu0 %v83
    %113 = vmatprep.subr.mxu0 0.0
    %114 = vmatpush1.msra.mxu0 %v84
    %115 = vmatprep.subr.mxu0 0.0
    %116 = vmatpush1.msra.mxu0 %v85
    %117 = vmatprep.subr.mxu0 0.0
    %118 = vmatpush1.msra.mxu0 %v86
    %119 = vmatprep.subr.mxu0 0.0
    %120 = vmatpush1.msra.mxu0 %v87
    %121 = vmatprep.subr.mxu0 0.0
    %122 = vmatpush1.msra.mxu0 %v88
    %123 = vmatprep.subr.mxu0 0.0
    %124 = vmatpush1.msra.mxu0 %v89
    %125 = vmatprep.subr.mxu0 0.0
    %126 = vmatpush1.msra.mxu0 %v90
    %127 = vmatprep.subr.mxu0 0.0
    %128 = vmatpush1.msra.mxu0 %v91
    %129 = vmatprep.subr.mxu0 0.0
    %130 = vmatpush1.msra.mxu0 %v92
    %131 = vmatprep.subr.mxu0 0.0
    %132 = vmatpush1.msra.mxu0 %v93
    %133 = vmatprep.subr.mxu0 0.0
    %134 = vmatpush1.msra.mxu0 0.0
    %135 = vmatprep.subr.mxu0 0.0
    %136 = vmatpush1.msra.mxu0 0.0
    %137 = vmatprep.subr.mxu0 0.0
    %138 = vmatpush1.msra.mxu0 0.0
    %139 = vmatprep.subr.mxu0 0.0
    %140 = vmatpush1.msra.mxu0 0.0
    %141 = vmatprep.subr.mxu0 0.0
    %142 = vmatpush1.msra.mxu0 0.0
    %143 = vmatprep.subr.mxu0 0.0
    %144 = vmatpush1.msra.mxu0 0.0
    %145 = vmatprep.subr.mxu0 0.0
    %146 = vmatpush1.msra.mxu0 0.0
    %147 = vmatprep.subr.mxu0 0.0
    %148 = vmatpush1.msra.mxu0 0.0
    %149 = vmatprep.subr.mxu0 0.0
    %150 = vmatpush1.msra.mxu0 0.0
    %151 = vmatprep.subr.mxu0 0.0
    %152 = vmatpush1.msra.mxu0 0.0
    %153 = vmatprep.subr.mxu0 0.0
    %154 = vmatpush1.msra.mxu0 0.0
    %155 = vmatprep.subr.mxu0 0.0
    %156 = vmatpush1.msra.mxu0 0.0
    %157 = vmatprep.subr.mxu0 0.0
    %158 = vmatpush1.msra.mxu0 0.0
    %159 = vmatprep.subr.mxu0 0.0
    %160 = vmatpush1.msra.mxu0 0.0
    %161 = vmatprep.subr.mxu0 0.0
    %162 = vmatpush1.msra.mxu0 0.0
    %163 = vmatprep.subr.mxu0 0.0
    %164 = vmatpush1.msra.mxu0 0.0
    %165 = vmatprep.mubr.f32.mxu0 0.0
    %166 = vmatmul.mubr.f32.gmra.mrb[0].mxu0 %v76
    %v167 = vpop.f32.mrb[0].mxu0
    %v168 = vadd.f32 %v99, %v167
    %v169 = vpop.f32.mrb[0].mxu0
    %170 = vmatprep.mubr.f32.mxu0 0.0
    %171 = vmatmul.mubr.f32.gmra.mrb[0].mxu0 %v77
    %v172 = vpop.f32.mrb[0].mxu0
    %v173 = vadd.f32 %v99, %v172
    %v174 = vpop.f32.mrb[0].mxu0
    %175 = vdwg.mxu0
    %v176 = vmul.f32 %v168, 0.5
    %v177 = vmul.f32 %v173, 0.5
    %v178 = vmul.f32 %v168, 0.70710677
    %v179 = vmul.f32 %v173, 0.70710677
    %v180 = verf.f32.pop %v178
    %v181 = verf.f32.pop %v179
    %v182 = vadd.f32 %v180, 1.0
    %v183 = vadd.f32 %v181, 1.0
    %v184 = vmul.f32 %v176, %v182
    %v185 = vmul.f32 %v177, %v183
    %v186 = vld [vmem:[#allocation3] sm:$0xff]
    %v187 = vld [vmem:[#allocation3 + $0x8] sm:$0xff]
    %188 = vadd.xlane.f32.xlu0 %v184
    %v189 = vpop.xlane.xlu0 %188
    %190 = vadd.xlane.f32.xlu0 %v185
    %v191 = vpop.xlane.xlu0 %190
    %v192 = vadd.f32 %v186, %v189
    %v193 = vadd.f32 %v187, %v191
    %vm194 = vcmask 7168
    %195 = vst.msk [vmem:[#allocation3] sm:$0xff] %vm194, %v192
    %196 = vst.msk [vmem:[#allocation3 + $0x8] sm:$0xff] %vm194, %v193
    %v197 = vld [vmem:[#allocation4] sm:$0xff]
    %v198 = vld [vmem:[#allocation4 + $0x8] sm:$0xff]
    %v199 = vmul.f32 %v184, %v184
    %v200 = vmul.f32 %v185, %v185
    %201 = vadd.xlane.f32.xlu0 %v199
    %v202 = vpop.xlane.xlu0 %201
    %203 = vadd.xlane.f32.xlu0 %v200
    %v204 = vpop.xlane.xlu0 %203
    %v205 = vadd.f32 %v197, %v202
    %v206 = vadd.f32 %v198, %v204
    %207 = vst.msk [vmem:[#allocation4] sm:$0xff] %vm194, %v205
    %208 = vst.msk [vmem:[#allocation4 + $0x8] sm:$0xff] %vm194, %v206
    %v209 = vld [vmem:[#allocation2] sm:$0xff]
    %v210 = vld [vmem:[#allocation2 + $0x8] sm:$0xff]
    %v211 = vld [vmem:[#allocation10] sm:$0xff]
    %v212 = vld [vmem:[#allocation10 + $0x8] sm:$0xff]
    %v213 = vld [vmem:[#allocation10 + $0x10] sm:$0xff]
    %v214 = vld [vmem:[#allocation10 + $0x18] sm:$0xff]
    %v215 = vld [vmem:[#allocation10 + $0x20] sm:$0xff]
    %v216 = vld [vmem:[#allocation10 + $0x28] sm:$0xff]
    %v217 = vld [vmem:[#allocation10 + $0x30] sm:$0xff]
    %v218 = vld [vmem:[#allocation10 + $0x38] sm:$0xff]
    %v219 = vld [vmem:[#allocation10 + $0x40] sm:$0xff]
    %v220 = vld [vmem:[#allocation10 + $0x48] sm:$0xff]
    %v221 = vld [vmem:[#allocation10 + $0x50] sm:$0xff]
    %v222 = vld [vmem:[#allocation10 + $0x58] sm:$0xff]
    %v223 = vld [vmem:[#allocation10 + $0x60] sm:$0xff]
    %v224 = vld [vmem:[#allocation10 + $0x68] sm:$0xff]
    %v225 = vld [vmem:[#allocation10 + $0x70] sm:$0xff]
    %v226 = vld [vmem:[#allocation10 + $0x78] sm:$0xff]
    %227 = vmatprep.subr.mxu0 0.0
    %228 = vmatpush1.msra.mxu0 %v211
    %229 = vmatprep.subr.mxu0 0.0
    %230 = vmatpush1.msra.mxu0 %v212
    %231 = vmatprep.subr.mxu0 0.0
    %232 = vmatpush1.msra.mxu0 %v213
    %233 = vmatprep.subr.mxu0 0.0
    %234 = vmatpush1.msra.mxu0 %v214
    %235 = vmatprep.subr.mxu0 0.0
    %236 = vmatpush1.msra.mxu0 %v215
    %237 = vmatprep.subr.mxu0 0.0
    %238 = vmatpush1.msra.mxu0 %v216
    %239 = vmatprep.subr.mxu0 0.0
    %240 = vmatpush1.msra.mxu0 %v217
    %241 = vmatprep.subr.mxu0 0.0
    %242 = vmatpush1.msra.mxu0 %v218
    %243 = vmatprep.subr.mxu0 0.0
    %244 = vmatpush1.msra.mxu0 %v219
    %245 = vmatprep.subr.mxu0 0.0
    %246 = vmatpush1.msra.mxu0 %v220
    %247 = vmatprep.subr.mxu0 0.0
    %248 = vmatpush1.msra.mxu0 %v221
    %249 = vmatprep.subr.mxu0 0.0
    %250 = vmatpush1.msra.mxu0 %v222
    %251 = vmatprep.subr.mxu0 0.0
    %252 = vmatpush1.msra.mxu0 %v223
    %253 = vmatprep.subr.mxu0 0.0
    %254 = vmatpush1.msra.mxu0 %v224
    %255 = vmatprep.subr.mxu0 0.0
    %256 = vmatpush1.msra.mxu0 %v225
    %257 = vmatprep.subr.mxu0 0.0
    %258 = vmatpush1.msra.mxu0 %v226
    %259 = vmatprep.subr.mxu0 0.0
    %260 = vmatpush1.msra.mxu0 0.0
    %261 = vmatprep.subr.mxu0 0.0
    %262 = vmatpush1.msra.mxu0 0.0
    %263 = vmatprep.subr.mxu0 0.0
    %264 = vmatpush1.msra.mxu0 0.0
    %265 = vmatprep.subr.mxu0 0.0
    %266 = vmatpush1.msra.mxu0 0.0
    %267 = vmatprep.subr.mxu0 0.0
    %268 = vmatpush1.msra.mxu0 0.0
    %269 = vmatprep.subr.mxu0 0.0
    %270 = vmatpush1.msra.mxu0 0.0
    %271 = vmatprep.subr.mxu0 0.0
    %272 = vmatpush1.msra.mxu0 0.0
    %273 = vmatprep.subr.mxu0 0.0
    %274 = vmatpush1.msra.mxu0 0.0
    %275 = vmatprep.subr.mxu0 0.0
    %276 = vmatpush1.msra.mxu0 0.0
    %277 = vmatprep.subr.mxu0 0.0
    %278 = vmatpush1.msra.mxu0 0.0
    %279 = vmatprep.subr.mxu0 0.0
    %280 = vmatpush1.msra.mxu0 0.0
    %281 = vmatprep.subr.mxu0 0.0
    %282 = vmatpush1.msra.mxu0 0.0
    %283 = vmatprep.subr.mxu0 0.0
    %284 = vmatpush1.msra.mxu0 0.0
    %285 = vmatprep.subr.mxu0 0.0
    %286 = vmatpush1.msra.mxu0 0.0
    %287 = vmatprep.subr.mxu0 0.0
    %288 = vmatpush1.msra.mxu0 0.0
    %289 = vmatprep.subr.mxu0 0.0
    %290 = vmatpush1.msra.mxu0 0.0
    %291 = vmatprep.mubr.f32.mxu0 0.0
    %292 = vmatmul.mubr.f32.gmra.mrb[0].mxu0 %v184
    %v293 = vpop.f32.mrb[0].mxu0
    %v294 = vadd.f32 0.0, %v293
    %v295 = vpop.f32.mrb[0].mxu0
    %296 = vmatprep.mubr.f32.mxu0 0.0
    %297 = vmatmul.mubr.f32.gmra.mrb[0].mxu0 %v185
    %v298 = vpop.f32.mrb[0].mxu0
    %v299 = vadd.f32 0.0, %v298
    %v300 = vpop.f32.mrb[0].mxu0
    %301 = vdwg.mxu0
    %v302 = vadd.f32 %v209, %v294
    %v303 = vadd.f32 %v210, %v299
    %304 = vst [vmem:[#allocation2] sm:$0xff] %v302
    %305 = vst [vmem:[#allocation2 + $0x8] sm:$0xff] %v303
    // Predicated region
    $region42: #{tpu_custom_call.1} parent=1 // pred_check
      %p306 = pneg %p65
    $region43: #{tpu_custom_call.1} parent=1 // pred_check_branch
      %308 = sbr.rel (%p306) target = $region45
    $region44: #{tpu_custom_call.1} parent=1 // pred_region
      %v309 = vld [vmem:[#allocation3] sm:$0xff]
      %v310 = vld [vmem:[#allocation3 + $0x8] sm:$0xff]
      %v311 = vmul.f32 %v309, 0.0078125
      %v312 = vmul.f32 %v310, 0.0078125
      %v313 = vld [vmem:[#allocation4] sm:$0xff]
      %v314 = vld [vmem:[#allocation4 + $0x8] sm:$0xff]
      %v315 = vmul.f32 %v313, 0.0078125
      %v316 = vmul.f32 %v314, 0.0078125
      %v317 = vmul.f32 %v311, %v311
      %v318 = vmul.f32 %v312, %v312
      %v319 = vsub.f32 %v315, %v317
      %v320 = vsub.f32 %v316, %v318
      %v321 = vmax.f32 %v319, 0.0
      %v322 = vmax.f32 %v320, 0.0
      %v323 = vadd.f32 %v321, 1e-05
      %v324 = vadd.f32 %v322, 1e-05
      %v325 = vrsqrt.pop %v323
      %v326 = vrsqrt.pop %v324
      %v327 = vld [vmem:[#allocation2] sm:$0xff]
      %v328 = vld [vmem:[#allocation2 + $0x8] sm:$0xff]
      %330 = vset.pattern.permute.xlu0 0
      %331 = vperm.xlu0 %330, %v325
      %v332 = vpop.permute.xlu0 %331
      %335 = vset.pattern.permute.xlu0 0
      %336 = vperm.xlu0 %335, %v326
      %v337 = vpop.permute.xlu0 %336
      %v339 = vmul.f32 %v327, %v332
      %v340 = vmul.f32 %v328, %v337
      %v341 = vmul.f32 %v311, %v325
      %v342 = vmul.f32 %v312, %v326
      %v343 = vld [vmem:[%s4] sm:$0x1]
      %345 = vset.pattern.permute.xlu0 0
      %346 = vperm.xlu0 %345, %v341
      %v347 = vpop.permute.xlu0 %346
      %350 = vset.pattern.permute.xlu0 0
      %351 = vperm.xlu0 %350, %v342
      %v352 = vpop.permute.xlu0 %351
      %v355 = vlaneseq
      %v356 = vshrl.u32 %v355, 7
      %v357 = vsub.s32 0, %v356
      %v358 = vrot.slane %v343, %v357
      %v360 = vmul.f32 %v347, %v358
      %v361 = vmul.f32 %v352, %v358
      %v362 = vsub.f32 %v339, %v360
      %v363 = vsub.f32 %v340, %v361
      %v364 = vld [vmem:[%s5] sm:$0x1]
      %v366 = vlaneseq
      %v367 = vshrl.u32 %v366, 7
      %v368 = vsub.s32 0, %v367
      %v369 = vrot.slane %v364, %v368
      %v371 = vadd.f32 %v362, %v369
      %v372 = vadd.f32 %v363, %v369
      %373 = vst [vmem:[#allocation11] sm:$0xff] %v371
      %374 = vst [vmem:[#allocation11 + $0x8] sm:$0xff] %v372
    $region45: #{tpu_custom_call.1} parent=1 // pred_fallthru
      _
    // Predicated region
    $region46: #{tpu_custom_call.1} parent=1 // pred_check
      _
    $region47: #{tpu_custom_call.1} parent=1 // pred_check_branch
      %376 = sbr.rel (0) target = $region49
    $region48: #{tpu_custom_call.1} parent=1 // pred_region
      %s378 = ssub.s32 256, 256
      %379 = vsyncadd [#allocation7], %s378
      %s380 = sshll.u32 [#allocation11], 4
      %s381 = int_to_ptr.vmem [resolvable:$true] %s380
      %386 = dma.vmem_to_hbm [thread:$0]  %s381, 256, %s6, [#allocation7], 128, 128, 8
    $region49: #{tpu_custom_call.1} parent=1 // pred_fallthru
      _
    // Predicated region
    $region50: #{tpu_custom_call.1} parent=1 // pred_check
      _
    $region51: #{tpu_custom_call.1} parent=1 // pred_check_branch
      %388 = sbr.rel (0) target = $region53
    $region52: #{tpu_custom_call.1} parent=1 // pred_region
      %389 = dma.done [#allocation7], 256
    $region53: #{tpu_custom_call.1} parent=1 // pred_fallthru
      _
    %390 = vsyncpa [#allocation6], 1
    %391 = vsyncpa [#allocation9], 1
    %392 = vsyncpa [#allocation7], 1

</llo_original>
